<compile_context>
chip_gen: v7x
topology: tpu7x:2x2x1
jax: 0.10.0
libtpu: 0.0.40
codegen_flags: <defaults>
</compile_context>

<pallas_src>
import jax
import jax.numpy as jnp
import numpy as np
from jax.experimental import pallas as pl
from jax.experimental.pallas import tpu as pltpu

# Fixed JPEG luminance quantization table (transposed, as in the module).
_Y_TABLE = np.array(
    [[16, 11, 10, 16, 24, 40, 51, 61],
     [12, 12, 14, 19, 26, 58, 60, 55],
     [14, 13, 16, 24, 40, 57, 69, 56],
     [14, 17, 22, 29, 51, 87, 80, 62],
     [18, 22, 37, 56, 68, 109, 103, 77],
     [24, 35, 55, 64, 81, 104, 113, 92],
     [49, 64, 78, 87, 103, 121, 120, 101],
     [72, 92, 95, 98, 112, 100, 103, 99]],
    dtype=np.float32,
).T  # shape (8, 8)


def _dequant_kernel(img_ref, table_ref, out_ref):
    # img_ref/out_ref: (tile_rows, lanes); table_ref: (8, lanes) resident,
    # every sublane row holds the same flattened-table pattern.
    img = img_ref[...]
    t = table_ref[...]
    r, lanes = img.shape
    # (r, lanes) -> (r//8, 8, lanes) splits the sublane dim on an 8-row tile
    # boundary (layout no-op), so the (8, lanes) table multiplies each vreg
    # directly with matching sublanes; pure VPU work, HBM-bandwidth bound.
    out_ref[...] = (img.reshape(r // 8, 8, lanes) * t).reshape(r, lanes)


def _device_kind():
    try:
        return jax.devices()[0].device_kind.lower()
    except Exception:
        return ""


def _round_up(x, m):
    return -(-x // m) * m


def _tile_plan(rows, lanes):
    """Pick (tile_rows, grid, vmem_limit_bytes) per chip generation."""
    is_v7 = "v7" in _device_kind()
    vmem_row_bytes = max(lanes, 128) * 4          # lane-padded VMEM footprint/row
    if is_v7:
        target_bytes = 4 << 20                    # ~16 MiB total w/ double-buffering
        vmem_limit = 32 << 20                     # raise scoped VMEM (64 MiB physical)
    else:
        target_bytes = 2 << 20                    # ~8 MiB total; fits v5e's 16 MiB default
        vmem_limit = None
    max_tile = max(8, (target_bytes // vmem_row_bytes) // 8 * 8)
    tile_rows = min(max_tile, _round_up(rows, 8))
    grid = pl.cdiv(rows, tile_rows)
    if is_v7:
        # 2 TensorCores: prefer an even number of grid steps (>=2) when there
        # is enough work so "parallel" sharding splits evenly across cores.
        if grid == 1 and rows > 8:
            tile_rows = _round_up(pl.cdiv(rows, 2), 8)
            grid = pl.cdiv(rows, tile_rows)
        tries = 0
        while grid > 1 and grid % 2 == 1 and tile_rows > 8 and tries < 64:
            tile_rows -= 8
            grid = pl.cdiv(rows, tile_rows)
            tries += 1
    return tile_rows, grid, vmem_limit


def y_dequantize(image, factor=1.0, *, min_pallas_bytes=4 << 20,
                 force_pallas=False):
    """Pallas implementation of y_dequantize.forward.

    Args:
      image: f32[B, 8, 8] batch of 8x8 DCT coefficient blocks.
      factor: compression factor; Python float or traced scalar.
    Returns:
      f32[B, 8, 8]
    """
    image = jnp.asarray(image, jnp.float32)
    B, H, W = image.shape
    assert H == 8 and W == 8, "y_dequantize operates on 8x8 blocks"

    # Fold factor into the tiny 64-entry table (works for static or traced factor).
    factor_f32 = jnp.asarray(factor, jnp.float32)
    table_flat = jnp.asarray(_Y_TABLE.reshape(-1)) * factor_f32      # (64,)

    n_elems = B * 64
    # A lone broadcast-multiply is something XLA runs at HBM roofline and can
    # fuse with producers/consumers; only use standalone Pallas when large/forced.
    if (n_elems * 4 < min_pallas_bytes) and not force_pallas:
        return image * table_flat.reshape(8, 8)

    # Copy-free slab view (reshape only; no pad / concat / slice around the call).
    if B % 2 == 0:
        lanes, rows = 128, (B * 64) // 128        # lane-dense: 2 blocks per row
    else:
        lanes, rows = 64, B                       # 1 block per row; 64 == full last dim
    slab = image.reshape(rows, lanes)

    # Vreg-shaped resident table: each of the 8 sublane rows is the flattened
    # 64-entry table repeated lanes//64 times.
    table_tile = jnp.tile(table_flat, (8, lanes // 64))               # (8, lanes)

    tile_rows, grid, vmem_limit = _tile_plan(rows, lanes)

    cost = pl.CostEstimate(flops=n_elems, transcendentals=0,
                           bytes_accessed=2 * n_elems * 4 + 8 * lanes * 4)

    out_slab = pl.pallas_call(
        _dequant_kernel,
        out_shape=jax.ShapeDtypeStruct((rows, lanes), jnp.float32),
        grid_spec=pltpu.PrefetchScalarGridSpec(
            num_scalar_prefetch=0,
            grid=(grid,),
            in_specs=[
                pl.BlockSpec((tile_rows, lanes), lambda i: (i, 0)),   # image tile
                pl.BlockSpec((8, lanes), lambda i: (0, 0)),           # table (resident)
            ],
            out_specs=pl.BlockSpec((tile_rows, lanes), lambda i: (i, 0)),
        ),
        compiler_params=pltpu.CompilerParams(
            dimension_semantics=("parallel",),
            vmem_limit_bytes=vmem_limit),
        cost_estimate=cost,
    )(slab, table_tile)

    return out_slab.reshape(B, 8, 8)


if __name__ == "__main__":
    key = jax.random.PRNGKey(0)

    # Even batch -> lane-dense (B//2, 128) path.
    B1 = 16
    img1 = jax.random.normal(key, (B1, 8, 8), dtype=jnp.float32) * 10.0
    out1 = jax.block_until_ready(y_dequantize(img1, 1.0, force_pallas=True))
    ref1 = img1 * (jnp.asarray(_Y_TABLE) * 1.0)
    np.testing.assert_allclose(np.asarray(out1), np.asarray(ref1),
                               rtol=1e-6, atol=1e-6)

    # Odd batch + non-unit factor -> copy-free (B, 64) path with masked tail rows.
    B2 = 37
    img2 = jax.random.normal(jax.random.PRNGKey(1), (B2, 8, 8),
                             dtype=jnp.float32) * 5.0
    out2 = jax.block_until_ready(y_dequantize(img2, 2.0, force_pallas=True))
    ref2 = img2 * (jnp.asarray(_Y_TABLE) * 2.0)
    np.testing.assert_allclose(np.asarray(out2), np.asarray(ref2),
                               rtol=1e-6, atol=1e-6)

    print("KERNEL_OK")
</pallas_src>

<mosaic_0001>
module attributes {stable_mosaic.version = 11 : i64} {
  func.func @_dequant_kernel(%arg0: i32, %arg1: memref<8x128xf32, #tpu.memory_space<vmem>>, %arg2: memref<8x128xf32, #tpu.memory_space<vmem>>, %arg3: memref<8x128xf32, #tpu.memory_space<vmem>>) attributes {dimension_semantics = [#tpu.dimension_semantics<parallel>], iteration_bounds = array<i64: 1>, scalar_prefetch = 0 : i64, scratch_operands = 0 : i64, tpu.core_type = #tpu.core_type<tc>, window_params = [{transform_indices = @transform_0, window_bounds = array<i64: 8, 128>}, {pipeline_mode = #tpu.pipeline_mode<synchronous>, transform_indices = @transform_1, window_bounds = array<i64: 8, 128>}, {transform_indices = @transform_2, window_bounds = array<i64: 8, 128>}]} {
    %c0 = arith.constant 0 : index
    %c0_0 = arith.constant 0 : index
    %0 = vector.load %arg1[%c0, %c0_0] : memref<8x128xf32, #tpu.memory_space<vmem>>, vector<8x128xf32>
    %c0_1 = arith.constant 0 : index
    %c0_2 = arith.constant 0 : index
    %1 = vector.load %arg2[%c0_1, %c0_2] : memref<8x128xf32, #tpu.memory_space<vmem>>, vector<8x128xf32>
    %2 = vector.shape_cast %0 : vector<8x128xf32> to vector<1x8x128xf32>
    %3 = vector.shape_cast %1 : vector<8x128xf32> to vector<1x8x128xf32>
    %4 = arith.mulf %2, %3 : vector<1x8x128xf32>
    %5 = vector.shape_cast %4 : vector<1x8x128xf32> to vector<8x128xf32>
    %c0_3 = arith.constant 0 : index
    %c0_4 = arith.constant 0 : index
    %6 = vector.load %arg3[%c0_3, %c0_4] : memref<8x128xf32, #tpu.memory_space<vmem>>, vector<8x128xf32>
    tpu.vector_store %arg3[%c0_3, %c0_4], %5 {strides = array<i32>} : memref<8x128xf32, #tpu.memory_space<vmem>>, vector<8x128xf32>,
    return
  }
  func.func @transform_0(%arg0: i32) -> (i32, i32) {
    %c0_i32 = arith.constant 0 : i32
    %c0_i32_0 = arith.constant 0 : i32
    return %arg0, %c0_i32 : i32, i32
  }
  func.func @transform_1(%arg0: i32) -> (i32, i32) {
    %c0_i32 = arith.constant 0 : i32
    %c0_i32_0 = arith.constant 0 : i32
    %c0_i32_1 = arith.constant 0 : i32
    return %c0_i32, %c0_i32_0 : i32, i32
  }
  func.func @transform_2(%arg0: i32) -> (i32, i32) {
    %c0_i32 = arith.constant 0 : i32
    %c0_i32_0 = arith.constant 0 : i32
    return %arg0, %c0_i32 : i32, i32
  }
}

</mosaic_0001>

<llo_original>
// kernel: tpu_custom_call.1
$region0: #{tpu_custom_call.1}
  #allocation0 [shape = 'u32[]', space=smem, size = 0x4, offset = 0x4, fixed_abs, tag = 'smem constant byte address 0x4 - core index']
  #allocation1 [shape = 'u32[144,128]{1,0:T(1,128)}', space=vmem, size = 0x12000, scoped, tag = 'internal scratch']
  %s0 = inlined_call_operand.hbm [shape: f32[8,128], index: 0, kind: input, shape index: {}]
  %s1 = inlined_call_operand.hbm [shape: f32[8,128], index: 1, kind: input, shape index: {}]
  %s2 = inlined_call_operand.hbm [shape: f32[8,128], index: 2, kind: output, shape index: {}]
  %s3 = sld [smem:[#allocation0]]
  $region26: #{tpu_custom_call.1} parent=0
    _
  %s5 = ssub.s32 1, %s3
  %s6 = scalar_select 0, %s5, %s3
  $region1: #{tpu_custom_call.1} parent=0
    #allocation2 [shape = 'u8[4096]{0}', space=vmem, size = 0x1000, scoped, tag = 'input window, operand 0, single buffered']
    #allocation3 [shape = 's32[1]{0}', space=sflag, size = 0x4, scoped, tag = 'scoped memory for tpu_custom_call.1']
    #allocation4 [shape = 's32[1]{0}', space=sflag, size = 0x4, scoped, tag = 'scoped memory for tpu_custom_call.1']
    #allocation5 [shape = 'u8[4096]{0}', space=vmem, size = 0x1000, scoped, tag = 'input window, operand 1, single buffered']
    #allocation6 [shape = 's32[1]{0}', space=sflag, size = 0x4, scoped, tag = 'scoped memory for tpu_custom_call.1']
    #allocation7 [shape = 'u8[4096]{0}', space=vmem, size = 0x1000, scoped, tag = 'output window, operand 0, single buffered']
    %7 = vsyncpa [#allocation3], 0
    %8 = vsyncpa [#allocation6], 0
    %9 = vsyncpa [#allocation4], 0
    // Predicated region
    $region2: #{tpu_custom_call.1} parent=1 // pred_check
      _
    $region3: #{tpu_custom_call.1} parent=1 // pred_check_branch
      %11 = sbr.rel (0) target = $region5
    $region4: #{tpu_custom_call.1} parent=1 // pred_region
      %s13 = ssub.s32 128, 128
      %14 = vsyncadd [#allocation3], %s13
      %s16 = sshll.u32 [#allocation2], 4
      %s17 = int_to_ptr.vmem [resolvable:$true] %s16
      %19 = dma.hbm_to_vmem [thread:$0]  %s0, 128, %s17, [#allocation3]
    $region5: #{tpu_custom_call.1} parent=1 // pred_fallthru
      _
    // Predicated region
    $region6: #{tpu_custom_call.1} parent=1 // pred_check
      _
    $region7: #{tpu_custom_call.1} parent=1 // pred_check_branch
      %21 = sbr.rel (0) target = $region9
    $region8: #{tpu_custom_call.1} parent=1 // pred_region
      %s23 = ssub.s32 128, 128
      %24 = vsyncadd [#allocation6], %s23
      %s26 = sshll.u32 [#allocation5], 4
      %s27 = int_to_ptr.vmem [resolvable:$true] %s26
      %29 = dma.hbm_to_vmem [thread:$0]  %s1, 128, %s27, [#allocation6]
    $region9: #{tpu_custom_call.1} parent=1 // pred_fallthru
      _
    // Predicated region
    $region10: #{tpu_custom_call.1} parent=1 // pred_check
      _
    $region11: #{tpu_custom_call.1} parent=1 // pred_check_branch
      %31 = sbr.rel (0) target = $region13
    $region12: #{tpu_custom_call.1} parent=1 // pred_region
      %32 = dma.done [#allocation3], 128
    $region13: #{tpu_custom_call.1} parent=1 // pred_fallthru
      _
    // Predicated region
    $region14: #{tpu_custom_call.1} parent=1 // pred_check
      _
    $region15: #{tpu_custom_call.1} parent=1 // pred_check_branch
      %34 = sbr.rel (0) target = $region17
    $region16: #{tpu_custom_call.1} parent=1 // pred_region
      %35 = dma.done [#allocation6], 128
    $region17: #{tpu_custom_call.1} parent=1 // pred_fallthru
      _
    %v36 = vld [vmem:[#allocation2] sm:$0xff]
    %v37 = vld [vmem:[#allocation5] sm:$0xff]
    %v38 = vmul.f32 %v36, %v37
    %39 = vst [vmem:[#allocation7] sm:$0xff] %v38
    // Predicated region
    $region18: #{tpu_custom_call.1} parent=1 // pred_check
      _
    $region19: #{tpu_custom_call.1} parent=1 // pred_check_branch
      %41 = sbr.rel (0) target = $region21
    $region20: #{tpu_custom_call.1} parent=1 // pred_region
      %s43 = ssub.s32 128, 128
      %44 = vsyncadd [#allocation4], %s43
      %s46 = sshll.u32 [#allocation7], 4
      %s47 = int_to_ptr.vmem [resolvable:$true] %s46
      %49 = dma.vmem_to_hbm [thread:$0]  %s47, 128, %s2, [#allocation4]
    $region21: #{tpu_custom_call.1} parent=1 // pred_fallthru
      _
    // Predicated region
    $region22: #{tpu_custom_call.1} parent=1 // pred_check
      _
    $region23: #{tpu_custom_call.1} parent=1 // pred_check_branch
      %51 = sbr.rel (0) target = $region25
    $region24: #{tpu_custom_call.1} parent=1 // pred_region
      %52 = dma.done [#allocation4], 128
    $region25: #{tpu_custom_call.1} parent=1 // pred_fallthru
      _
    %53 = vsyncpa [#allocation3], 1
    %54 = vsyncpa [#allocation6], 1
    %55 = vsyncpa [#allocation4], 1

</llo_original>
